<compile_context>
chip_gen: v5e
topology: v5e:2x2
jax: 0.10.0
libtpu: 0.0.40
codegen_flags: <defaults>
</compile_context>

<pallas_src>
import jax
import jax.numpy as jnp
from jax import lax
from jax.experimental import pallas as pl
from jax.experimental.pallas import tpu as pltpu

# TODO(synk): confirm ROOTTANH_GROWTH against the real config (assumed 4.0).
ROOTTANH_GROWTH = 4.0

_LANES = 128
_MIN_STEPS = 8       # aim for >=8 grid steps so v7x's 2 TCs both engage
_MIN_ROW_TILE = 256  # keep per-step DMA well above the ~0.35 us fixed cost


def _round_up(x, m):
    return ((x + m - 1) // m) * m


def _block_config():
    """(block_bytes_per_buffer, vmem_limit_bytes) by TPU generation."""
    try:
        kind = jax.devices()[0].device_kind.lower()
    except Exception:
        kind = ""
    if "v7" in kind:
        # 64 MiB physical VMEM: 4 MiB block -> 16 MiB double-buffered footprint.
        return 4 << 20, 40 << 20
    if "v6" in kind:
        # 128 MiB physical, 32 MiB scoped default.
        return 4 << 20, 28 << 20
    # v5e / unknown: conservative.  2 MiB block -> 8 MiB footprint, and on
    # v5e's ~0.8 TB/s HBM a 2 MiB block already amortizes per-step overhead.
    return 2 << 20, 20 << 20


def _root(base):
    """base**(1/ROOTTANH_GROWTH) for base >= 1, avoiding exp/log when possible."""
    if ROOTTANH_GROWTH == 4.0:
        return lax.rsqrt(lax.rsqrt(base))   # (b^-1/2)^-1/2 = b^1/4, base > 0
    if ROOTTANH_GROWTH == 2.0:
        return jnp.sqrt(base)
    return jnp.power(base, 1.0 / ROOTTANH_GROWTH)


def _root_tanh_kernel(x_ref, o_ref):
    xf = x_ref[...].astype(jnp.float32)
    base = xf * xf + 1.0
    o_ref[...] = (_root(base) * jnp.tanh(xf)).astype(o_ref.dtype)


def _root_tanh_jnp(x):
    """Plain-jnp fallback used only for the <128-element unaligned tail."""
    xf = x.astype(jnp.float32)
    base = xf * xf + 1.0
    return (_root(base) * jnp.tanh(xf)).astype(x.dtype)


def root_tanh(x):
    """Elementwise RootTanh via a Pallas TPU kernel. Any shape / float dtype."""
    orig_shape = x.shape
    orig_dtype = x.dtype
    n = x.size
    if n == 0:
        return x

    flat = x.reshape(-1)
    rows = n // _LANES
    tail_n = n - rows * _LANES

    # Tail (<=127 elems): compute directly in jnp, no pad/slice full copies.
    tail_out = _root_tanh_jnp(flat[rows * _LANES:]) if tail_n else None
    if rows == 0:
        return tail_out.reshape(orig_shape)

    slab = flat[: rows * _LANES].reshape(rows, _LANES)

    itemsize = jnp.dtype(orig_dtype).itemsize
    block_bytes, vmem_limit = _block_config()
    sub = max(8, 32 // itemsize)  # sublane packing: 8 f32 / 16 bf16 / 32 int8

    # Byte-targeted tile, rounded down to the sublane multiple.
    target_rows = max(sub, (block_bytes // (_LANES * itemsize)) // sub * sub)
    # Force multiple grid steps on mid/large inputs (v7x dual-TC sharding),
    # but never drop below the 256-row floor nor exceed what's needed.
    split_rows = _round_up(pl.cdiv(rows, _MIN_STEPS), sub)
    row_tile = min(target_rows, max(_MIN_ROW_TILE, split_rows))
    row_tile = min(row_tile, _round_up(rows, sub))
    grid = (pl.cdiv(rows, row_tile),)  # cdiv grid: last partial block is masked

    nbulk = rows * _LANES
    cost = pl.CostEstimate(
        flops=5 * nbulk,                      # x*x, +1, muls
        transcendentals=3 * nbulk,            # rsqrt, rsqrt, tanh
        bytes_accessed=2 * nbulk * itemsize,  # one read + one write pass
    )

    out_slab = pl.pallas_call(
        _root_tanh_kernel,
        out_shape=jax.ShapeDtypeStruct((rows, _LANES), orig_dtype),
        grid_spec=pltpu.PrefetchScalarGridSpec(
            num_scalar_prefetch=0,
            grid=grid,
            in_specs=[pl.BlockSpec((row_tile, _LANES), lambda i: (i, 0))],
            out_specs=pl.BlockSpec((row_tile, _LANES), lambda i: (i, 0)),
        ),
        compiler_params=pltpu.CompilerParams(
            dimension_semantics=("parallel",),
            vmem_limit_bytes=vmem_limit,
        ),
        cost_estimate=cost,
    )(slab)

    out_flat = out_slab.reshape(-1)
    if tail_n:
        out_flat = jnp.concatenate([out_flat, tail_out])
    return out_flat.reshape(orig_shape)


def root_tanh_ref(x):
    xf = x.astype(jnp.float32)
    return (jnp.power(xf * xf + 1.0, 1.0 / ROOTTANH_GROWTH)
            * jnp.tanh(xf)).astype(x.dtype)


if __name__ == "__main__":
    key = jax.random.PRNGKey(0)

    # NCHW input, consistent with using the module on conv activations.
    x = jax.random.normal(key, (2, 4, 16, 16), dtype=jnp.float32) * 3.0
    y = root_tanh(x)
    jax.block_until_ready(y)
    y_ref = root_tanh_ref(x)
    assert y.shape == x.shape and y.dtype == x.dtype
    assert jnp.allclose(y, y_ref, atol=1e-5, rtol=1e-5), "mismatch vs reference"

    # Also exercise the unaligned-tail path (size not a multiple of 128).
    x2 = jax.random.normal(jax.random.PRNGKey(1), (2, 4, 15, 15),
                           dtype=jnp.float32) * 3.0
    y2 = root_tanh(x2)
    jax.block_until_ready(y2)
    assert jnp.allclose(y2, root_tanh_ref(x2), atol=1e-5, rtol=1e-5), \
        "mismatch vs reference (tail path)"

    print("KERNEL_OK")
</pallas_src>

<mosaic_0001>
module attributes {stable_mosaic.version = 11 : i64} {
  func.func @_root_tanh_kernel(%arg0: i32, %arg1: memref<16x128xf32, #tpu.memory_space<vmem>>, %arg2: memref<16x128xf32, #tpu.memory_space<vmem>>) attributes {dimension_semantics = [#tpu.dimension_semantics<parallel>], iteration_bounds = array<i64: 1>, scalar_prefetch = 0 : i64, scratch_operands = 0 : i64, tpu.core_type = #tpu.core_type<tc>, window_params = [{transform_indices = @transform_0, window_bounds = array<i64: 16, 128>}, {transform_indices = @transform_1, window_bounds = array<i64: 16, 128>}]} {
    %c0 = arith.constant 0 : index
    %c0_0 = arith.constant 0 : index
    %0 = vector.load %arg1[%c0, %c0_0] : memref<16x128xf32, #tpu.memory_space<vmem>>, vector<16x128xf32>
    %1 = arith.mulf %0, %0 : vector<16x128xf32>
    %cst = arith.constant 1.000000e+00 : f32
    %2 = vector.broadcast %cst : f32 to vector<16x128xf32>
    %3 = arith.addf %1, %2 : vector<16x128xf32>
    %4 = math.rsqrt %3 : vector<16x128xf32>
    %5 = math.rsqrt %4 : vector<16x128xf32>
    %6 = math.tanh %0 : vector<16x128xf32>
    %7 = arith.mulf %5, %6 : vector<16x128xf32>
    %c0_1 = arith.constant 0 : index
    %c0_2 = arith.constant 0 : index
    %8 = vector.load %arg2[%c0_1, %c0_2] : memref<16x128xf32, #tpu.memory_space<vmem>>, vector<16x128xf32>
    tpu.vector_store %arg2[%c0_1, %c0_2], %7 {strides = array<i32>} : memref<16x128xf32, #tpu.memory_space<vmem>>, vector<16x128xf32>,
    return
  }
  func.func @transform_0(%arg0: i32) -> (i32, i32) {
    %c0_i32 = arith.constant 0 : i32
    %c0_i32_0 = arith.constant 0 : i32
    return %arg0, %c0_i32 : i32, i32
  }
  func.func @transform_1(%arg0: i32) -> (i32, i32) {
    %c0_i32 = arith.constant 0 : i32
    %c0_i32_0 = arith.constant 0 : i32
    return %arg0, %c0_i32 : i32, i32
  }
}

</mosaic_0001>

<llo_original>
// kernel: tpu_custom_call.1
$region0: #{tpu_custom_call.1}
  #allocation0 [shape = 'u32[]', space=smem, size = 0x4, offset = 0x4, fixed_abs, tag = 'smem constant byte address 0x4 - core index']
  #allocation1 [shape = 'u32[72,128]{1,0:T(1,128)}', space=vmem, size = 0x9000, scoped, tag = 'internal scratch']
  %s0 = inlined_call_operand.hbm [shape: f32[16,128], index: 0, kind: input, shape index: {}]
  %s1 = inlined_call_operand.hbm [shape: f32[16,128], index: 1, kind: output, shape index: {}]
  %s2 = sld [smem:[#allocation0]]
  $region18: #{tpu_custom_call.1} parent=0
    _
  %s4 = ssub.s32 1, %s2
  %s5 = scalar_select 0, %s4, %s2
  $region1: #{tpu_custom_call.1} parent=0
    #allocation2 [shape = 'u8[8192]{0}', space=vmem, size = 0x2000, scoped, tag = 'input window, operand 0, single buffered']
    #allocation3 [shape = 's32[1]{0}', space=sflag, size = 0x4, scoped, tag = 'scoped memory for tpu_custom_call.1']
    #allocation4 [shape = 's32[1]{0}', space=sflag, size = 0x4, scoped, tag = 'scoped memory for tpu_custom_call.1']
    #allocation5 [shape = 'u8[8192]{0}', space=vmem, size = 0x2000, scoped, tag = 'output window, operand 0, single buffered']
    %6 = vsyncpa [#allocation3], 0
    %7 = vsyncpa [#allocation4], 0
    // Predicated region
    $region2: #{tpu_custom_call.1} parent=1 // pred_check
      _
    $region3: #{tpu_custom_call.1} parent=1 // pred_check_branch
      %9 = sbr.rel (0) target = $region5
    $region4: #{tpu_custom_call.1} parent=1 // pred_region
      %11 = vsyncadd [#allocation3], 0
      %s12 = sshll.u32 %s0, 4
      %s13 = int_to_ptr.hbm [resolvable:$true] %s12
      %s14 = sshll.u32 [#allocation2], 4
      %s15 = int_to_ptr.vmem [resolvable:$true] %s14
      %20 = dma.hbm_to_vmem [thread:$0]  %s13, 256, %s15, [#allocation3], 128, 128, 8
    $region5: #{tpu_custom_call.1} parent=1 // pred_fallthru
      _
    // Predicated region
    $region6: #{tpu_custom_call.1} parent=1 // pred_check
      _
    $region7: #{tpu_custom_call.1} parent=1 // pred_check_branch
      %22 = sbr.rel (0) target = $region9
    $region8: #{tpu_custom_call.1} parent=1 // pred_region
      %24 = dma.done [#allocation3], 256
    $region9: #{tpu_custom_call.1} parent=1 // pred_fallthru
      _
    %v25 = vld [vmem:[#allocation2] sm:$0xff]
    %v26 = vld [vmem:[#allocation2 + $0x8] sm:$0xff]
    %v27 = vmul.f32 %v25, %v25
    %v28 = vmul.f32 %v26, %v26
    %v29 = vadd.f32 %v27, 1.0
    %v30 = vadd.f32 %v28, 1.0
    %v31 = vrsqrt.pop %v29
    %v32 = vmul.f32 %v31, %v29
    %v33 = vmul.f32 %v32, %v31
    %v34 = vmul.f32 0.5, %v33
    %v35 = vsub.f32 1.5, %v34
    %v36 = vmul.f32 %v31, %v35
    %vm37 = vweird.f32 %v29
    %vm38 = vweird.f32 %v31
    %vm39 = vmor %vm37, %vm38
    %v40 = vsel %vm39, %v31, %v36
    %v41 = vrsqrt.pop %v30
    %v42 = vmul.f32 %v41, %v30
    %v43 = vmul.f32 %v42, %v41
    %v44 = vmul.f32 0.5, %v43
    %v45 = vsub.f32 1.5, %v44
    %v46 = vmul.f32 %v41, %v45
    %vm47 = vweird.f32 %v30
    %vm48 = vweird.f32 %v41
    %vm49 = vmor %vm47, %vm48
    %v50 = vsel %vm49, %v41, %v46
    %v51 = vrsqrt.pop %v40
    %v52 = vmul.f32 %v51, %v40
    %v53 = vmul.f32 %v52, %v51
    %v54 = vmul.f32 0.5, %v53
    %v55 = vsub.f32 1.5, %v54
    %v56 = vmul.f32 %v51, %v55
    %vm57 = vweird.f32 %v40
    %vm58 = vweird.f32 %v51
    %vm59 = vmor %vm57, %vm58
    %v60 = vsel %vm59, %v51, %v56
    %v61 = vrsqrt.pop %v50
    %v62 = vmul.f32 %v61, %v50
    %v63 = vmul.f32 %v62, %v61
    %v64 = vmul.f32 0.5, %v63
    %v65 = vsub.f32 1.5, %v64
    %v66 = vmul.f32 %v61, %v65
    %vm67 = vweird.f32 %v50
    %vm68 = vweird.f32 %v61
    %vm69 = vmor %vm67, %vm68
    %v70 = vsel %vm69, %v61, %v66
    %v71 = vtanh.pop %v25
    %v72 = vtanh.pop %v26
    %v73 = vmul.f32 %v60, %v71
    %v74 = vmul.f32 %v70, %v72
    %75 = vst [vmem:[#allocation5] sm:$0xff] %v73
    %76 = vst [vmem:[#allocation5 + $0x8] sm:$0xff] %v74
    // Predicated region
    $region10: #{tpu_custom_call.1} parent=1 // pred_check
      _
    $region11: #{tpu_custom_call.1} parent=1 // pred_check_branch
      %78 = sbr.rel (0) target = $region13
    $region12: #{tpu_custom_call.1} parent=1 // pred_region
      %80 = vsyncadd [#allocation4], 0
      %s81 = sshll.u32 [#allocation5], 4
      %s82 = int_to_ptr.vmem [resolvable:$true] %s81
      %s83 = sshll.u32 %s1, 4
      %s84 = int_to_ptr.hbm [resolvable:$true] %s83
      %89 = dma.vmem_to_hbm [thread:$0]  %s82, 256, %s84, [#allocation4], 128, 128, 8
    $region13: #{tpu_custom_call.1} parent=1 // pred_fallthru
      _
    // Predicated region
    $region14: #{tpu_custom_call.1} parent=1 // pred_check
      _
    $region15: #{tpu_custom_call.1} parent=1 // pred_check_branch
      %91 = sbr.rel (0) target = $region17
    $region16: #{tpu_custom_call.1} parent=1 // pred_region
      %93 = dma.done [#allocation4], 256
    $region17: #{tpu_custom_call.1} parent=1 // pred_fallthru
      _
    %94 = vsyncpa [#allocation3], 1
    %95 = vsyncpa [#allocation4], 1

</llo_original>
